<compile_context>
chip_gen: v5e
topology: v5e:2x2
jax: 0.10.0
libtpu: 0.0.40
codegen_flags: <defaults>
</compile_context>

<pallas_src>
import functools
import math

import jax
import jax.numpy as jnp
from jax.experimental import pallas as pl
from jax.experimental.pallas import tpu as pltpu


def _neutral_value(dtype):
    dtype = jnp.dtype(dtype)
    if jnp.issubdtype(dtype, jnp.floating):
        return float("-inf")
    if jnp.issubdtype(dtype, jnp.integer):
        return int(jnp.iinfo(dtype).min)
    raise ValueError(f"unsupported dtype for max_readout: {dtype}")


def _max_readout_kernel(x_ref, o_ref, *, m, c, w, k_half, total,
                        first_masked, has_masked, neutral):
    """One grid step: fold a (TB, W) chunk of the flattened stream into the
    resident (TB, C) running-max accumulator."""
    s = pl.program_id(0)                  # stream split (v7x dual-TC)
    k = pl.program_id(2)                  # reduction step within the split
    g = s * k_half + k                    # global chunk index

    @pl.when(k == 0)
    def _init():
        o_ref[...] = jnp.full(o_ref.shape, neutral, o_ref.dtype)

    def _accumulate(masked):
        acc = o_ref[...]
        for j in range(m):
            xs = x_ref[:, j * c:(j + 1) * c]          # lane-aligned static slice
            if masked:
                col = jax.lax.broadcasted_iota(jnp.int32, xs.shape, 1)
                col = col + (g * w + j * c)
                xs = jnp.where(col < total, xs, jnp.asarray(neutral, xs.dtype))
            acc = jnp.maximum(acc, xs)
        o_ref[...] = acc

    if has_masked:
        # Hot path (full chunks) stays pure vld + vmax; only the tail chunk(s)
        # pay for the iota / select.
        @pl.when(g < first_masked)
        def _hot():
            _accumulate(False)

        @pl.when(g >= first_masked)
        def _tail():
            _accumulate(True)
    else:
        _accumulate(False)


def max_readout(seq: jax.Array, *,
                min_pallas_bytes: int = 256 * 1024,
                target_tile_bytes: int = 4 * 1024 * 1024) -> jax.Array:
    """seq: (B, N, D) -> (B, D), max over axis 1 (== torch.max(seq, 1).values)."""
    B, N, D = seq.shape
    dtype = seq.dtype
    itemsize = jnp.dtype(dtype).itemsize
    neutral = _neutral_value(dtype)

    total_bytes = B * N * D * itemsize
    # Tiny inputs: pallas_call launch/pipeline overhead dominates -> fused XLA reduce.
    # (N*D >= 2**31 would overflow the in-kernel int32 offsets; also defer to XLA.)
    if N == 1 or total_bytes < min_pallas_bytes or N * D >= 2 ** 31:
        return jnp.max(seq, axis=1)

    # Sublane fold: stack `r` consecutive node segments of each batch row so the
    # kernel tile fills all 8 sublanes even for tiny B (free row-major reshape).
    r = 1
    if B < 8:
        for cand in range(min(8 // B, N), 0, -1):
            if N % cand == 0:
                r = cand
                break
    Bf, Nf = B * r, N // r
    Lf = Nf * D                                   # flattened per-row stream length
    x = seq.reshape(Bf, Lf)                       # free view

    TB = min(Bf, 8)
    fD = (D * 128) // math.gcd(D, 128)            # lcm(D, 128): lane-dense, feature-aligned unit
    if TB * fD * itemsize > 6 * 1024 * 1024:
        # Pathological odd D: one lane-dense unit alone would blow scoped VMEM.
        return jnp.max(seq, axis=1)

    # Chunk geometry: input tile (TB, W), W = m*C, C a multiple of fD so every
    # slice/lane position maps to a fixed feature (pos % D); kernel reduces the
    # m sub-slices into a (TB, C) resident accumulator.
    if Lf < fD:
        C, m = Lf, 1                              # whole (tiny) row in one slice
    else:
        tw_target = max(fD, target_tile_bytes // (TB * itemsize))
        u = max(1, min(tw_target // fD, Lf // fD))   # fD-units per tile, <= row
        c_units = max(1, pl.cdiv(u, 64))             # keep the unrolled loop <= 64
        C = c_units * fD
        m = max(1, u // c_units)
    W = m * C
    K_total = pl.cdiv(Lf, W)

    # v7x: if batch tiling yields only one parallel tile, split the stream in two
    # so both TensorCores stream HBM (extra step is negligible on v5e/v6e).
    n_splits = 2 if (pl.cdiv(Bf, TB) == 1 and K_total >= 4) else 1
    K_half = pl.cdiv(K_total, n_splits)

    first_masked = K_total - 1 if (Lf % W != 0) else K_total
    has_masked = n_splits * K_half > first_masked

    grid = (n_splits, pl.cdiv(Bf, TB), K_half)

    kernel = functools.partial(
        _max_readout_kernel, m=m, c=C, w=W, k_half=K_half, total=Lf,
        first_masked=first_masked, has_masked=has_masked, neutral=neutral)

    out_wide = pl.pallas_call(
        kernel,
        out_shape=jax.ShapeDtypeStruct((n_splits, Bf, C), dtype),
        grid_spec=pltpu.PrefetchScalarGridSpec(
            num_scalar_prefetch=0,
            grid=grid,
            in_specs=[pl.BlockSpec(
                (TB, W),
                # Clamp overflow chunks (odd split) onto the last real chunk;
                # they are fully masked to `neutral` inside the kernel.
                lambda s, i, k: (i, jnp.minimum(s * K_half + k, K_total - 1)))],
            out_specs=pl.BlockSpec((None, TB, C), lambda s, i, k: (s, i, 0)),
        ),
        compiler_params=pltpu.CompilerParams(
            dimension_semantics=("parallel", "parallel", "arbitrary"),
        ),
        cost_estimate=pl.CostEstimate(
            flops=B * N * D,
            transcendentals=0,
            bytes_accessed=total_bytes + n_splits * Bf * C * itemsize),
    )(x)

    # Tiny epilogue: fold the split axis, the sublane fold and the lane groups.
    out = out_wide.reshape(n_splits, B, r, C // D, D)
    return jnp.max(out, axis=(0, 2, 3))


if __name__ == "__main__":
    key = jax.random.PRNGKey(0)

    # Nominal module shapes: batch=2, nodes (reduced axis)=8, hidden=32.
    B, N, D = 2, 8, 32
    seq = jax.random.normal(key, (B, N, D), dtype=jnp.float32)
    ref = jnp.max(seq, axis=1)

    # Default path (tiny input -> fast path).
    out = max_readout(seq)
    jax.block_until_ready(out)
    assert out.shape == (B, D)
    assert jnp.array_equal(out, ref), "MaxReadout mismatch (fast path)"

    # Same tiny shape forced through the Pallas kernel.
    out_k = max_readout(seq, min_pallas_bytes=0)
    jax.block_until_ready(out_k)
    assert jnp.array_equal(out_k, ref), "Pallas MaxReadout mismatch (tiny forced)"

    # Multi-chunk reduction with a masked tail chunk; negative-heavy inputs
    # catch any bad (zero) accumulator init.
    B2, N2, D2 = 2, 3000, 32
    seq2 = jax.random.normal(jax.random.PRNGKey(1), (B2, N2, D2), jnp.float32) - 3.0
    out2 = max_readout(seq2)
    jax.block_until_ready(out2)
    assert jnp.array_equal(out2, jnp.max(seq2, axis=1)), "mismatch (tail mask)"

    # Long stream: exercises the dual-TensorCore split (+ clamped overflow chunk).
    B3, N3, D3 = 2, 40000, 64
    seq3 = jax.random.normal(jax.random.PRNGKey(2), (B3, N3, D3), jnp.float32) - 3.0
    out3 = max_readout(seq3)
    jax.block_until_ready(out3)
    assert jnp.array_equal(out3, jnp.max(seq3, axis=1)), "mismatch (split)"

    # bf16 with D not a multiple of 128 (lane-densified via the flattened stream).
    B4, N4, D4 = 4, 2000, 48
    seq4 = jax.random.normal(jax.random.PRNGKey(3), (B4, N4, D4), jnp.bfloat16)
    out4 = max_readout(seq4)
    jax.block_until_ready(out4)
    assert jnp.array_equal(out4, jnp.max(seq4, axis=1)), "mismatch (bf16 odd D)"

    print("KERNEL_OK")
</pallas_src>

<mosaic_0001>
module attributes {stable_mosaic.version = 11 : i64} {
  func.func @_max_readout_kernel(%arg0: i32, %arg1: i32, %arg2: i32, %arg3: memref<8x64xf32, #tpu.memory_space<vmem>>, %arg4: memref<1x8x64xf32, #tpu.memory_space<vmem>>) attributes {dimension_semantics = [#tpu.dimension_semantics<parallel>, #tpu.dimension_semantics<parallel>, #tpu.dimension_semantics<arbitrary>], iteration_bounds = array<i64: 1, 1, 1>, scalar_prefetch = 0 : i64, scratch_operands = 0 : i64, tpu.core_type = #tpu.core_type<tc>, window_params = [{transform_indices = @transform_0, window_bounds = array<i64: 8, 64>}, {transform_indices = @transform_1, window_bounds = array<i64: 1, 8, 64>}]} {
    %c0_i32 = arith.constant 0 : i32
    %0 = arith.cmpi eq, %arg2, %c0_i32 : i32
    %1 = arith.extui %0 : i1 to i32
    %c0_i32_0 = arith.constant 0 : i32
    %2 = arith.cmpi ne, %1, %c0_i32_0 : i32
    scf.if %2 {
      %cst = arith.constant 0xFF800000 : f32
      %10 = vector.broadcast %cst : f32 to vector<8x64xf32>
      %c0_8 = arith.constant 0 : index
      %c0_9 = arith.constant 0 : index
      %c0_10 = arith.constant 0 : index
      %11 = vector.load %arg4[%c0_8, %c0_9, %c0_10] : memref<1x8x64xf32, #tpu.memory_space<vmem>>, vector<1x8x64xf32>
      %12 = vector.shape_cast %11 : vector<1x8x64xf32> to vector<8x64xf32>
      %13 = vector.shape_cast %10 : vector<8x64xf32> to vector<1x8x64xf32>
      tpu.vector_store %arg4[%c0_8, %c0_9, %c0_10], %13 {strides = array<i32>} : memref<1x8x64xf32, #tpu.memory_space<vmem>>, vector<1x8x64xf32>,
    } else {
    }
    %c0 = arith.constant 0 : index
    %c0_1 = arith.constant 0 : index
    %c0_2 = arith.constant 0 : index
    %3 = vector.load %arg4[%c0, %c0_1, %c0_2] : memref<1x8x64xf32, #tpu.memory_space<vmem>>, vector<1x8x64xf32>
    %4 = vector.shape_cast %3 : vector<1x8x64xf32> to vector<8x64xf32>
    %c0_3 = arith.constant 0 : index
    %c0_4 = arith.constant 0 : index
    %5 = vector.load %arg3[%c0_3, %c0_4] : memref<8x64xf32, #tpu.memory_space<vmem>>, vector<8x64xf32>
    %6 = arith.maximumf %4, %5 : vector<8x64xf32>
    %c0_5 = arith.constant 0 : index
    %c0_6 = arith.constant 0 : index
    %c0_7 = arith.constant 0 : index
    %7 = vector.load %arg4[%c0_5, %c0_6, %c0_7] : memref<1x8x64xf32, #tpu.memory_space<vmem>>, vector<1x8x64xf32>
    %8 = vector.shape_cast %7 : vector<1x8x64xf32> to vector<8x64xf32>
    %9 = vector.shape_cast %6 : vector<8x64xf32> to vector<1x8x64xf32>
    tpu.vector_store %arg4[%c0_5, %c0_6, %c0_7], %9 {strides = array<i32>} : memref<1x8x64xf32, #tpu.memory_space<vmem>>, vector<1x8x64xf32>,
    return
  }
  func.func @transform_0(%arg0: i32, %arg1: i32, %arg2: i32) -> (i32, i32) {
    %c1_i32 = arith.constant 1 : i32
    %0 = arith.muli %arg0, %c1_i32 : i32
    %1 = arith.addi %0, %arg2 : i32
    %c0_i32 = arith.constant 0 : i32
    %2 = arith.minsi %1, %c0_i32 : i32
    %c0_i32_0 = arith.constant 0 : i32
    return %arg1, %2 : i32, i32
  }
  func.func @transform_1(%arg0: i32, %arg1: i32, %arg2: i32) -> (i32, i32, i32) {
    %c0_i32 = arith.constant 0 : i32
    %c0_i32_0 = arith.constant 0 : i32
    return %arg0, %arg1, %c0_i32 : i32, i32, i32
  }
}

</mosaic_0001>

<llo_original>
// kernel: tpu_custom_call.1
$region0: #{tpu_custom_call.1}
  #allocation0 [shape = 'u32[]', space=smem, size = 0x4, offset = 0x4, fixed_abs, tag = 'smem constant byte address 0x4 - core index']
  #allocation1 [shape = 'u32[72,128]{1,0:T(1,128)}', space=vmem, size = 0x9000, scoped, tag = 'internal scratch']
  %s0 = inlined_call_operand.hbm [shape: f32[8,64], index: 0, kind: input, shape index: {}]
  %s1 = inlined_call_operand.hbm [shape: f32[1,8,64], index: 1, kind: output, shape index: {}]
  %s2 = sld [smem:[#allocation0]]
  $region22: #{tpu_custom_call.1} parent=0
    _
  %s4 = ssub.s32 1, %s2
  %s5 = scalar_select 0, %s4, %s2
  $region1: #{tpu_custom_call.1} parent=0
    #allocation2 [shape = 'u8[4096]{0}', space=vmem, size = 0x1000, scoped, tag = 'input window, operand 0, single buffered']
    #allocation3 [shape = 's32[1]{0}', space=sflag, size = 0x4, scoped, tag = 'scoped memory for tpu_custom_call.1']
    #allocation4 [shape = 's32[1]{0}', space=sflag, size = 0x4, scoped, tag = 'scoped memory for tpu_custom_call.1']
    #allocation5 [shape = 'u8[4096]{0}', space=vmem, size = 0x1000, scoped, tag = 'output window, operand 0, single buffered']
    %6 = vsyncpa [#allocation3], 0
    %7 = vsyncpa [#allocation4], 0
    // Predicated region
    $region2: #{tpu_custom_call.1} parent=1 // pred_check
      _
    $region3: #{tpu_custom_call.1} parent=1 // pred_check_branch
      %9 = sbr.rel (0) target = $region5
    $region4: #{tpu_custom_call.1} parent=1 // pred_region
      %s10 = sadd.s32 0, 0
      %p11 = scmp.lt.s32.totalorder %s10, 0
      %s12 = scalar_select %p11, %s10, 0
      %14 = vsyncadd [#allocation3], 0
      %s15 = smul.addr %s12, 8
      %s16 = scalar_lea.hbm %s0, %s15
      %s18 = sshll.u32 %s16, 4
      %s19 = int_to_ptr.hbm [resolvable:$true] %s18
      %s20 = sshll.u32 [#allocation2], 4
      %s21 = int_to_ptr.vmem [resolvable:$true] %s20
      %23 = dma.hbm_to_vmem [thread:$0]  %s19, 128, %s21, [#allocation3]
    $region5: #{tpu_custom_call.1} parent=1 // pred_fallthru
      _
    // Predicated region
    $region6: #{tpu_custom_call.1} parent=1 // pred_check
      _
    $region7: #{tpu_custom_call.1} parent=1 // pred_check_branch
      %25 = sbr.rel (0) target = $region9
    $region8: #{tpu_custom_call.1} parent=1 // pred_region
      %27 = dma.done [#allocation3], 128
    $region9: #{tpu_custom_call.1} parent=1 // pred_fallthru
      _
    %s28 = sadd.s32 0, 0
    %p29 = scmp.lt.s32.totalorder %s28, 0
    %s30 = scalar_select %p29, %s28, 0
    %p31 = scmp.eq.s32.totalorder 0, 0
    // Predicated region
    $region10: #{tpu_custom_call.1} parent=1 // pred_check
      %p32 = pneg %p31
    $region11: #{tpu_custom_call.1} parent=1 // pred_check_branch
      %34 = sbr.rel (%p32) target = $region13
    $region12: #{tpu_custom_call.1} parent=1 // pred_region
      %vm35 = vcmask 523264
      %36 = vst.msk [vmem:[#allocation5] sm:$0xff] %vm35, -inf
    $region13: #{tpu_custom_call.1} parent=1 // pred_fallthru
      _
    %v37 = vld [vmem:[#allocation5] sm:$0xff]
    %v38 = vld [vmem:[#allocation2] sm:$0xff]
    %v39 = vmax.f32 %v37, %v38
    %vm40 = vcmask 523264
    %41 = vst.msk [vmem:[#allocation5] sm:$0xff] %vm40, %v39
    // Predicated region
    $region14: #{tpu_custom_call.1} parent=1 // pred_check
      _
    $region15: #{tpu_custom_call.1} parent=1 // pred_check_branch
      %43 = sbr.rel (0) target = $region17
    $region16: #{tpu_custom_call.1} parent=1 // pred_region
      %45 = vsyncadd [#allocation4], 0
      %s47 = sshll.u32 [#allocation5], 4
      %s48 = int_to_ptr.vmem [resolvable:$true] %s47
      %s49 = sshll.u32 %s1, 4
      %s50 = int_to_ptr.hbm [resolvable:$true] %s49
      %52 = dma.vmem_to_hbm [thread:$0]  %s48, 128, %s50, [#allocation4]
    $region17: #{tpu_custom_call.1} parent=1 // pred_fallthru
      _
    // Predicated region
    $region18: #{tpu_custom_call.1} parent=1 // pred_check
      _
    $region19: #{tpu_custom_call.1} parent=1 // pred_check_branch
      %54 = sbr.rel (0) target = $region21
    $region20: #{tpu_custom_call.1} parent=1 // pred_region
      %56 = dma.done [#allocation4], 128
    $region21: #{tpu_custom_call.1} parent=1 // pred_fallthru
      _
    %57 = vsyncpa [#allocation3], 1
    %58 = vsyncpa [#allocation4], 1

</llo_original>
